<compile_context>
chip_gen: v5e
topology: v5e:2x2
jax: 0.10.0
libtpu: 0.0.40
codegen_flags: <defaults>
</compile_context>

<pallas_src>
import jax
import jax.numpy as jnp
from jax.experimental import pallas as pl
from jax.experimental.pallas import tpu as pltpu

B = 2          # per-problem batch; must be 2 so `v1, _ = out` unpacks along dim 0
IN_F = 256
OUT_F = 128
BN_EPS = 1e-5
P_BLOCK = 8    # problems per grid step (sublane-full (8,128) output block)


def _model_kernel(x_ref, w_ref, gs_ref, out_ref):
    """Fused Linear + BatchNorm1d(B=2 batch stats) + row-0 unpack + subtract,
    for a block of P independent problems.

    x:   (2, P, 256)  f32   sample-0 slab / sample-1 slab of each problem
    w:   (256, 128)   f32   torch weight transposed, so the kernel does x @ W
    gs:  (2, 128)     f32   row 0 = gamma, row 1 = beta - other (folded at setup)
    out: (P, 128)     f32   v2 = z[0] - other for each problem
    """
    x = x_ref[...]
    # Row difference: the Linear bias and the BN mean cancel exactly here.
    d_x = x[0] - x[1]                                              # (P, 256) VPU
    d = jnp.dot(d_x, w_ref[...],
                preferred_element_type=jnp.float32,
                precision=jax.lax.Precision.HIGHEST)               # (P, 128) MXU
    half = 0.5 * d                                                 # y[0] - batch mean
    # Closed-form BN for B=2: biased var = d^2/4 =>
    #   z[0] = gamma * half * rsqrt(half^2 + eps) + beta
    z0 = half * jax.lax.rsqrt(half * half + BN_EPS)                # EUP rsqrt
    gs = gs_ref[...]
    out_ref[...] = z0 * gs[0:1, :] + gs[1:2, :]                    # gamma scale + (beta-other)


def model_forward(x_packed, w, gs):
    """Batched fused forward over N independent problems.

    x_packed: (2, N, 256) f32 -- axis 0 = the two samples of each problem's
              batch, axis 1 = problem index.
    w:        (256, 128) f32
    gs:       (2, 128)   f32 -- [gamma; beta - other]
    Returns:  (N, 128) f32 -- v2 for each problem.
    """
    n = x_packed.shape[1]
    n_pad = ((n + P_BLOCK - 1) // P_BLOCK) * P_BLOCK
    if n_pad != n:
        x_packed = jnp.pad(x_packed, ((0, 0), (0, n_pad - n), (0, 0)))

    cost = pl.CostEstimate(
        flops=2 * IN_F * OUT_F * n_pad,
        transcendentals=OUT_F * n_pad,
        bytes_accessed=4 * (x_packed.size + w.size + gs.size + n_pad * OUT_F),
    )

    out = pl.pallas_call(
        _model_kernel,
        out_shape=jax.ShapeDtypeStruct((n_pad, OUT_F), jnp.float32),
        grid=(n_pad // P_BLOCK,),
        in_specs=[
            # Per-step problem slab.
            pl.BlockSpec((B, P_BLOCK, IN_F), lambda i: (0, i, 0)),
            # Constant block index => W DMA'd once, VMEM-resident across the grid.
            pl.BlockSpec((IN_F, OUT_F), lambda i: (0, 0)),
            # Packed gamma / (beta - other): also resident.
            pl.BlockSpec((B, OUT_F), lambda i: (0, 0)),
        ],
        out_specs=pl.BlockSpec((P_BLOCK, OUT_F), lambda i: (i, 0)),
        compiler_params=pltpu.CompilerParams(
            dimension_semantics=("parallel",)),   # split across TCs on v7x
        cost_estimate=cost,
    )(x_packed, w, gs)
    return out[:n]


def init_params(key):
    """Deterministic PyTorch-style init for Linear(256,128) + BatchNorm1d(128)."""
    kw, kb, ko = jax.random.split(key, 3)
    bound = 1.0 / jnp.sqrt(jnp.float32(IN_F))
    # Stored transposed relative to torch (torch weight is (128,256)); we keep
    # (256,128) so the kernel does x @ W directly.
    w = jax.random.uniform(kw, (IN_F, OUT_F), jnp.float32, -bound, bound)
    b = jax.random.uniform(kb, (1, OUT_F), jnp.float32, -bound, bound)
    gamma = jnp.ones((1, OUT_F), jnp.float32)
    beta = jnp.zeros((1, OUT_F), jnp.float32)
    other = jax.random.normal(ko, (1, OUT_F), jnp.float32)
    return w, b, gamma, beta, other


if __name__ == "__main__":
    key = jax.random.PRNGKey(0)
    k_x, k_p = jax.random.split(key)

    N_PROBLEMS = 16   # small demo size; grid of 2 steps of 8 problems each
    # (2, N, 256): the two B=2 samples of each of N independent problems.
    x_packed = jax.random.normal(k_x, (B, N_PROBLEMS, IN_F), jnp.float32)
    w, b, gamma, beta, other = init_params(k_p)

    # One-time parameter folding (setup, not per call): pack gamma with beta-other.
    gs = jnp.concatenate([gamma, beta - other], axis=0)          # (2, 128)

    v2 = model_forward(x_packed, w, gs)
    jax.block_until_ready(v2)

    # Pure-JAX reference of the original module math, applied independently per
    # problem: Linear WITH bias, BatchNorm1d with batch statistics (training
    # mode, biased variance), unpack row 0, subtract `other`.
    y = jnp.einsum("bnf,fo->bno", x_packed, w,
                   precision=jax.lax.Precision.HIGHEST) + b      # (2, N, 128)
    mean = y.mean(axis=0, keepdims=True)
    var = ((y - mean) ** 2).mean(axis=0, keepdims=True)
    z = (y - mean) / jnp.sqrt(var + BN_EPS) * gamma + beta
    v2_ref = z[0] - other                                        # (N, 128)

    assert v2.shape == (N_PROBLEMS, OUT_F)
    assert jnp.allclose(v2, v2_ref, atol=1e-3, rtol=1e-3), "mismatch vs reference"

    print("KERNEL_OK")
</pallas_src>

<mosaic_0001>
module attributes {stable_mosaic.version = 11 : i64} {
  func.func @_model_kernel(%arg0: i32, %arg1: memref<2x8x256xf32, #tpu.memory_space<vmem>>, %arg2: memref<256x128xf32, #tpu.memory_space<vmem>>, %arg3: memref<2x128xf32, #tpu.memory_space<vmem>>, %arg4: memref<8x128xf32, #tpu.memory_space<vmem>>) attributes {dimension_semantics = [#tpu.dimension_semantics<parallel>], iteration_bounds = array<i64: 2>, scalar_prefetch = 0 : i64, scratch_operands = 0 : i64, tpu.core_type = #tpu.core_type<tc>, window_params = [{transform_indices = @transform_0, window_bounds = array<i64: 2, 8, 256>}, {pipeline_mode = #tpu.pipeline_mode<synchronous>, transform_indices = @transform_1, window_bounds = array<i64: 256, 128>}, {pipeline_mode = #tpu.pipeline_mode<synchronous>, transform_indices = @transform_2, window_bounds = array<i64: 2, 128>}, {transform_indices = @transform_3, window_bounds = array<i64: 8, 128>}]} {
    %c0 = arith.constant 0 : index
    %c0_0 = arith.constant 0 : index
    %c0_1 = arith.constant 0 : index
    %0 = vector.load %arg1[%c0, %c0_0, %c0_1] : memref<2x8x256xf32, #tpu.memory_space<vmem>>, vector<2x8x256xf32>
    %1 = vector.extract_strided_slice %0 {offsets = [0, 0, 0], sizes = [1, 8, 256], strides = [1, 1, 1]} : vector<2x8x256xf32> to vector<1x8x256xf32>
    %2 = vector.shape_cast %1 : vector<1x8x256xf32> to vector<8x256xf32>
    %3 = vector.extract_strided_slice %0 {offsets = [1, 0, 0], sizes = [1, 8, 256], strides = [1, 1, 1]} : vector<2x8x256xf32> to vector<1x8x256xf32>
    %4 = vector.shape_cast %3 : vector<1x8x256xf32> to vector<8x256xf32>
    %5 = arith.subf %2, %4 : vector<8x256xf32>
    %c0_2 = arith.constant 0 : index
    %c0_3 = arith.constant 0 : index
    %6 = vector.load %arg2[%c0_2, %c0_3] : memref<256x128xf32, #tpu.memory_space<vmem>>, vector<256x128xf32>
    %cst = arith.constant dense<0.000000e+00> : vector<8x128xf32>
    %7 = tpu.matmul %5, %6, %cst {dimension_numbers = #tpu.dot_dimension_numbers<[1], [0], [0], [1], [0, 0, 1, 1], [], []>, precision = #tpu.contract_precision<fp32>} : vector<8x256xf32>, vector<256x128xf32>, vector<8x128xf32> -> vector<8x128xf32>
    %cst_4 = arith.constant 5.000000e-01 : f32
    %8 = vector.broadcast %cst_4 : f32 to vector<8x128xf32>
    %9 = arith.mulf %8, %7 : vector<8x128xf32>
    %10 = arith.mulf %9, %9 : vector<8x128xf32>
    %cst_5 = arith.constant 9.99999974E-6 : f32
    %11 = vector.broadcast %cst_5 : f32 to vector<8x128xf32>
    %12 = arith.addf %10, %11 : vector<8x128xf32>
    %13 = math.rsqrt %12 : vector<8x128xf32>
    %14 = arith.mulf %9, %13 : vector<8x128xf32>
    %c0_6 = arith.constant 0 : index
    %c0_7 = arith.constant 0 : index
    %15 = vector.load %arg3[%c0_6, %c0_7] : memref<2x128xf32, #tpu.memory_space<vmem>>, vector<2x128xf32>
    %16 = vector.extract_strided_slice %15 {offsets = [0, 0], sizes = [1, 128], strides = [1, 1]} : vector<2x128xf32> to vector<1x128xf32>
    %17 = vector.broadcast %16 : vector<1x128xf32> to vector<8x128xf32>
    %18 = arith.mulf %14, %17 : vector<8x128xf32>
    %19 = vector.extract_strided_slice %15 {offsets = [1, 0], sizes = [1, 128], strides = [1, 1]} : vector<2x128xf32> to vector<1x128xf32>
    %20 = vector.broadcast %19 : vector<1x128xf32> to vector<8x128xf32>
    %21 = arith.addf %18, %20 : vector<8x128xf32>
    %c0_8 = arith.constant 0 : index
    %c0_9 = arith.constant 0 : index
    %22 = vector.load %arg4[%c0_8, %c0_9] : memref<8x128xf32, #tpu.memory_space<vmem>>, vector<8x128xf32>
    tpu.vector_store %arg4[%c0_8, %c0_9], %21 {strides = array<i32>} : memref<8x128xf32, #tpu.memory_space<vmem>>, vector<8x128xf32>,
    return
  }
  func.func @transform_0(%arg0: i32) -> (i32, i32, i32) {
    %c0_i32 = arith.constant 0 : i32
    %c0_i32_0 = arith.constant 0 : i32
    %c0_i32_1 = arith.constant 0 : i32
    return %c0_i32, %arg0, %c0_i32_0 : i32, i32, i32
  }
  func.func @transform_1(%arg0: i32) -> (i32, i32) {
    %c0_i32 = arith.constant 0 : i32
    %c0_i32_0 = arith.constant 0 : i32
    %c0_i32_1 = arith.constant 0 : i32
    return %c0_i32, %c0_i32_0 : i32, i32
  }
  func.func @transform_2(%arg0: i32) -> (i32, i32) {
    %c0_i32 = arith.constant 0 : i32
    %c0_i32_0 = arith.constant 0 : i32
    %c0_i32_1 = arith.constant 0 : i32
    return %c0_i32, %c0_i32_0 : i32, i32
  }
  func.func @transform_3(%arg0: i32) -> (i32, i32) {
    %c0_i32 = arith.constant 0 : i32
    %c0_i32_0 = arith.constant 0 : i32
    return %arg0, %c0_i32 : i32, i32
  }
}

</mosaic_0001>

<llo_original>
// kernel: tpu_custom_call.1
$region0: #{tpu_custom_call.1}
  #allocation0 [shape = 'u32[]', space=smem, size = 0x4, offset = 0x4, fixed_abs, tag = 'smem constant byte address 0x4 - core index']
  #allocation1 [shape = 'u32[72,128]{1,0:T(1,128)}', space=vmem, size = 0x9000, scoped, tag = 'internal scratch']
  %s0 = inlined_call_operand.hbm [shape: f32[2,16,256], index: 0, kind: input, shape index: {}]
  %s1 = inlined_call_operand.hbm [shape: f32[256,128], index: 1, kind: input, shape index: {}]
  %s2 = inlined_call_operand.hbm [shape: f32[2,128], index: 2, kind: input, shape index: {}]
  %s3 = inlined_call_operand.hbm [shape: f32[16,128], index: 3, kind: output, shape index: {}]
  %s4 = sld [smem:[#allocation0]]
  $region57: #{tpu_custom_call.1} parent=0
    _
  %s6 = ssub.s32 1, %s4
  %s7 = scalar_select 0, %s6, %s4
  $region1: #{tpu_custom_call.1} parent=0
    #allocation2 [shape = 'u8[32768]{0}', space=vmem, size = 0x8000, scoped, tag = 'input window, operand 0']
    #allocation3 [shape = 's32[2]{0}', space=sflag, size = 0x8, scoped, tag = 'scoped memory for tpu_custom_call.1']
    #allocation4 [shape = 's32[2]{0}', space=sflag, size = 0x8, scoped, tag = 'scoped memory for tpu_custom_call.1']
    #allocation5 [shape = 'u8[131072]{0}', space=vmem, size = 0x20000, scoped, tag = 'input window, operand 1, single buffered']
    #allocation6 [shape = 's32[1]{0}', space=sflag, size = 0x4, scoped, tag = 'scoped memory for tpu_custom_call.1']
    #allocation7 [shape = 'u8[1024]{0}', space=vmem, size = 0x400, scoped, tag = 'input window, operand 2, single buffered']
    #allocation8 [shape = 'u8[8192]{0}', space=vmem, size = 0x2000, scoped, tag = 'output window, operand 0']
    %8 = vsyncpa [#allocation3], 0
    %s9 = scalar_lea.sflag [#allocation3], 1
    %10 = vsyncpa %s9, 0
    %11 = vsyncpa [#allocation6], 0
    %12 = vsyncpa [#allocation4], 0
    %s13 = scalar_lea.sflag [#allocation4], 1
    %14 = vsyncpa %s13, 0
    loop: start=0, step=1, limit=4
    $region2: #{tpu_custom_call.1} parent=1 // loop_pre_header
      _
    $region3: #{tpu_custom_call.1} parent=1 // loop_header
      %s16 = sphi 0, %s20
      %p17 = scmp.ge.s32.totalorder %s16, 4
      %s26 = sphi 0, %s28
      %s29 = sphi 0, %s26
      %s30 = sphi 0, %s29
      %s46 = sphi 0, %s30
      %s50 = sphi 0, %s50
      %s52 = sphi 0, %s50
      %s53 = sphi 0, %s52
      %s67 = sphi 0, %s53
      %s71 = sphi 0, %s71
      %s73 = sphi 0, %s71
      %s74 = sphi 0, %s73
      %s88 = sphi 0, %s74
      %s94 = sphi 0, %s96
      %s97 = sphi 0, %s94
      %s98 = sphi 0, %s97
      %s114 = sphi 0, %s98
    $region4: #{tpu_custom_call.1} parent=1 // loop_header_branch
      %19 = sbr.rel (%p17) target = $region8
    $region5: #{tpu_custom_call.1} parent=1 // loop_body
      %s21 = ssub.s32 %s16, 1
      %s22 = ssub.s32 %s16, 2
      %s23 = sadd.s32 %s16, 1
      %s24 = ssub.s32 %s16, %s23
      %p25 = scmp.eq.s32.totalorder %s24, 0
      %s27 = sadd.s32 %s26, 1
      %s28 = scalar_select %p25, %s26, %s27
      %p31 = pneg %p25
      %p32 = scmp.eq.s32.totalorder %s16, 1
      %p33 = por %p31, %p32
      %p34 = scmp.ne.s32.totalorder %s26, %s29
      %p35 = scmp.eq.s32.totalorder %s16, 0
      %p36 = por %p34, %p35
      %p37 = scmp.ne.s32.totalorder %s26, %s29
      %p38 = scmp.eq.s32.totalorder %s21, 1
      %p39 = por %p37, %p38
      %p40 = scmp.ne.s32.totalorder %s29, %s30
      %p41 = scmp.eq.s32.totalorder %s21, 0
      %p42 = por %p40, %p41
      %p43 = scmp.ne.s32.totalorder %s29, %s30
      %p44 = scmp.eq.s32.totalorder %s22, 1
      %p45 = por %p43, %p44
      %p47 = scmp.ne.s32.totalorder %s30, %s46
      %p48 = scmp.eq.s32.totalorder %s22, 0
      %p49 = por %p47, %p48
      %s51 = sadd.s32 %s50, 1
      %p54 = scmp.eq.s32.totalorder %s16, 1
      %p55 = scmp.ne.s32.totalorder %s50, %s52
      %p56 = scmp.eq.s32.totalorder %s16, 0
      %p57 = por %p55, %p56
      %p58 = scmp.ne.s32.totalorder %s50, %s52
      %p59 = scmp.eq.s32.totalorder %s21, 1
      %p60 = por %p58, %p59
      %p61 = scmp.ne.s32.totalorder %s52, %s53
      %p62 = scmp.eq.s32.totalorder %s21, 0
      %p63 = por %p61, %p62
      %p64 = scmp.ne.s32.totalorder %s52, %s53
      %p65 = scmp.eq.s32.totalorder %s22, 1
      %p66 = por %p64, %p65
      %p68 = scmp.ne.s32.totalorder %s53, %s67
      %p69 = scmp.eq.s32.totalorder %s22, 0
      %p70 = por %p68, %p69
      %s72 = sadd.s32 %s71, 1
      %p75 = scmp.eq.s32.totalorder %s16, 1
      %p76 = scmp.ne.s32.totalorder %s71, %s73
      %p77 = scmp.eq.s32.totalorder %s16, 0
      %p78 = por %p76, %p77
      %p79 = scmp.ne.s32.totalorder %s71, %s73
      %p80 = scmp.eq.s32.totalorder %s21, 1
      %p81 = por %p79, %p80
      %p82 = scmp.ne.s32.totalorder %s73, %s74
      %p83 = scmp.eq.s32.totalorder %s21, 0
      %p84 = por %p82, %p83
      %p85 = scmp.ne.s32.totalorder %s73, %s74
      %p86 = scmp.eq.s32.totalorder %s22, 1
      %p87 = por %p85, %p86
      %p89 = scmp.ne.s32.totalorder %s74, %s88
      %p90 = scmp.eq.s32.totalorder %s22, 0
      %p91 = por %p89, %p90
      %s92 = ssub.s32 %s16, %s23
      %p93 = scmp.eq.s32.totalorder %s92, 0
      %s95 = sadd.s32 %s94, 1
      %s96 = scalar_select %p93, %s94, %s95
      %p99 = pneg %p93
      %p100 = scmp.eq.s32.totalorder %s16, 1
      %p101 = por %p99, %p100
      %p102 = scmp.ne.s32.totalorder %s94, %s97
      %p103 = scmp.eq.s32.totalorder %s16, 0
      %p104 = por %p102, %p103
      %p105 = scmp.ne.s32.totalorder %s94, %s97
      %p106 = scmp.eq.s32.totalorder %s21, 1
      %p107 = por %p105, %p106
      %p108 = scmp.ne.s32.totalorder %s97, %s98
      %p109 = scmp.eq.s32.totalorder %s21, 0
      %p110 = por %p108, %p109
      %p111 = scmp.ne.s32.totalorder %s97, %s98
      %p112 = scmp.eq.s32.totalorder %s22, 1
      %p113 = por %p111, %p112
      %p115 = scmp.ne.s32.totalorder %s98, %s114
      %p116 = scmp.eq.s32.totalorder %s22, 0
      %p117 = por %p115, %p116
      %p118 = scmp.le.s32.totalorder 1, %s16
      %p119 = scmp.lt.s32.totalorder %s16, 3
      %p120 = pnand %p118, %p119
      %p121 = pneg %p120
      // Predicated region
      $region9: #{tpu_custom_call.1} parent=5 // pred_check
        _
      $region10: #{tpu_custom_call.1} parent=5 // pred_check_branch
        %123 = sbr.rel (%p120) target = $region12
      $region11: #{tpu_custom_call.1} parent=5 // pred_region
        %s124 = ssub.s32 %s16, 1
        // Predicated region
        $region13: #{tpu_custom_call.1} parent=11 // pred_check
          %p125 = pneg %p63
        $region14: #{tpu_custom_call.1} parent=11 // pred_check_branch
          %127 = sbr.rel (%p125) target = $region16
        $region15: #{tpu_custom_call.1} parent=11 // pred_region
          %129 = vsyncadd [#allocation6], 0
          %s130 = sshll.u32 %s1, 4
          %s131 = int_to_ptr.hbm [resolvable:$true] %s130
          %s132 = sshll.u32 [#allocation5], 4
          %s133 = int_to_ptr.vmem [resolvable:$true] %s132
          %138 = dma.hbm_to_vmem [thread:$0]  %s131, 4096, %s133, [#allocation6], 128, 128, 8
        $region16: #{tpu_custom_call.1} parent=11 // pred_fallthru
          _
        // Predicated region
        $region17: #{tpu_custom_call.1} parent=11 // pred_check
          %p139 = pneg %p84
        $region18: #{tpu_custom_call.1} parent=11 // pred_check_branch
          %141 = sbr.rel (%p139) target = $region20
        $region19: #{tpu_custom_call.1} parent=11 // pred_region
          %143 = vsyncadd [#allocation6], 0
          %s145 = sshll.u32 %s2, 4
          %s146 = int_to_ptr.hbm [resolvable:$true] %s145
          %s147 = sshll.u32 [#allocation7], 4
          %s148 = int_to_ptr.vmem [resolvable:$true] %s147
          %150 = dma.hbm_to_vmem [thread:$0]  %s146, 32, %s148, [#allocation6]
        $region20: #{tpu_custom_call.1} parent=11 // pred_fallthru
          _
      $region12: #{tpu_custom_call.1} parent=5 // pred_fallthru
        _
      %p151 = scmp.lt.s32.totalorder %s16, 2
      // Predicated region
      $region21: #{tpu_custom_call.1} parent=5 // pred_check
        %p152 = pneg %p151
      $region22: #{tpu_custom_call.1} parent=5 // pred_check_branch
        %154 = sbr.rel (%p152) target = $region24
      $region23: #{tpu_custom_call.1} parent=5 // pred_region
        // Predicated region
        $region25: #{tpu_custom_call.1} parent=23 // pred_check
          %p155 = pneg %p36
        $region26: #{tpu_custom_call.1} parent=23 // pred_check_branch
          %157 = sbr.rel (%p155) target = $region28
        $region27: #{tpu_custom_call.1} parent=23 // pred_region
          %s158 = sand.u32 %s26, 1
          %s159 = scalar_lea.sflag [#allocation3], %s158
          %s160 = sand.u32 %s26, 1
          %s161 = smul.addr %s160, 32
          %s162 = scalar_lea.vmem [#allocation2], %s161
          %164 = vsyncadd %s159, 0
          %s165 = smul.addr %s16, 2
          %s166 = smul.addr %s165, 8
          %s167 = scalar_lea.hbm %s0, %s166
          %s168 = sshll.u32 %s167, 4
          %s169 = int_to_ptr.hbm [resolvable:$true] %s168
          %s170 = sshll.u32 %s162, 4
          %s171 = int_to_ptr.vmem [resolvable:$true] %s170
          %176 = dma.hbm_to_vmem [thread:$0]  %s169, 512, %s171, %s159, 512, 256, 16
        $region28: #{tpu_custom_call.1} parent=23 // pred_fallthru
          _
      $region24: #{tpu_custom_call.1} parent=5 // pred_fallthru
        _
      %p177 = scmp.le.s32.totalorder 1, %s16
      %p178 = scmp.lt.s32.totalorder %s16, 3
      %p179 = pnand %p177, %p178
      %p180 = pneg %p179
      // Predicated region
      $region29: #{tpu_custom_call.1} parent=5 // pred_check
        _
      $region30: #{tpu_custom_call.1} parent=5 // pred_check_branch
        %182 = sbr.rel (%p179) target = $region32
      $region31: #{tpu_custom_call.1} parent=5 // pred_region
        %s183 = ssub.s32 %s16, 1
        %s184 = sand.u32 %s29, 1
        %s185 = scalar_lea.sflag [#allocation3], %s184
        %s186 = sand.u32 %s29, 1
        %s187 = smul.addr %s186, 32
        %s188 = scalar_lea.vmem [#allocation2], %s187
        // Predicated region
        $region33: #{tpu_custom_call.1} parent=31 // pred_check
          %p189 = pneg %p42
        $region34: #{tpu_custom_call.1} parent=31 // pred_check_branch
          %191 = sbr.rel (%p189) target = $region36
        $region35: #{tpu_custom_call.1} parent=31 // pred_region
          %193 = dma.done %s185, 512
        $region36: #{tpu_custom_call.1} parent=31 // pred_fallthru
          _
        // Predicated region
        $region37: #{tpu_custom_call.1} parent=31 // pred_check
          %p194 = pneg %p63
        $region38: #{tpu_custom_call.1} parent=31 // pred_check_branch
          %196 = sbr.rel (%p194) target = $region40
        $region39: #{tpu_custom_call.1} parent=31 // pred_region
          %198 = dma.done [#allocation6], 4096
        $region40: #{tpu_custom_call.1} parent=31 // pred_fallthru
          _
        // Predicated region
        $region41: #{tpu_custom_call.1} parent=31 // pred_check
          %p199 = pneg %p84
        $region42: #{tpu_custom_call.1} parent=31 // pred_check_branch
          %201 = sbr.rel (%p199) target = $region44
        $region43: #{tpu_custom_call.1} parent=31 // pred_region
          %203 = dma.done [#allocation6], 32
        $region44: #{tpu_custom_call.1} parent=31 // pred_fallthru
          _
        %s204 = sand.u32 %s29, 1
        %s205 = scalar_lea.sflag [#allocation3], %s204
        %s206 = sand.u32 %s29, 1
        %s207 = smul.addr %s206, 32
        %s208 = scalar_lea.vmem [#allocation2], %s207
        %p209 = pneg %p42
        %p210 = pneg %p39
        %p211 = pneg %p63
        %p212 = pneg %p60
        %p213 = pneg %p84
        %p214 = pneg %p81
        %p215 = pneg %p110
        %p216 = pneg %p107
        %s217 = sand.u32 %s97, 1
        %s218 = scalar_lea.sflag [#allocation4], %s217
        %s219 = sand.u32 %s97, 1
        %s220 = smul.addr %s219, 8
        %s221 = scalar_lea.vmem [#allocation8], %s220
        %v222 = vld [vmem:[%s188] sm:$0xff]
        %v223 = vld [vmem:[%s188 + $0x8] sm:$0xff]
        %v224 = vld [vmem:[%s188 + $0x10] sm:$0xff]
        %v225 = vld [vmem:[%s188 + $0x18] sm:$0xff]
        %v226 = vsub.f32 %v222, %v224
        %v227 = vsub.f32 %v223, %v225
        %v228 = vld [vmem:[#allocation5] sm:$0xff]
        %v229 = vld [vmem:[#allocation5 + $0x8] sm:$0xff]
        %v230 = vld [vmem:[#allocation5 + $0x10] sm:$0xff]
        %v231 = vld [vmem:[#allocation5 + $0x18] sm:$0xff]
        %v232 = vld [vmem:[#allocation5 + $0x20] sm:$0xff]
        %v233 = vld [vmem:[#allocation5 + $0x28] sm:$0xff]
        %v234 = vld [vmem:[#allocation5 + $0x30] sm:$0xff]
        %v235 = vld [vmem:[#allocation5 + $0x38] sm:$0xff]
        %v236 = vld [vmem:[#allocation5 + $0x40] sm:$0xff]
        %v237 = vld [vmem:[#allocation5 + $0x48] sm:$0xff]
        %v238 = vld [vmem:[#allocation5 + $0x50] sm:$0xff]
        %v239 = vld [vmem:[#allocation5 + $0x58] sm:$0xff]
        %v240 = vld [vmem:[#allocation5 + $0x60] sm:$0xff]
        %v241 = vld [vmem:[#allocation5 + $0x68] sm:$0xff]
        %v242 = vld [vmem:[#allocation5 + $0x70] sm:$0xff]
        %v243 = vld [vmem:[#allocation5 + $0x78] sm:$0xff]
        %v244 = vld [vmem:[#allocation5 + $0x80] sm:$0xff]
        %v245 = vld [vmem:[#allocation5 + $0x88] sm:$0xff]
        %v246 = vld [vmem:[#allocation5 + $0x90] sm:$0xff]
        %v247 = vld [vmem:[#allocation5 + $0x98] sm:$0xff]
        %v248 = vld [vmem:[#allocation5 + $0xa0] sm:$0xff]
        %v249 = vld [vmem:[#allocation5 + $0xa8] sm:$0xff]
        %v250 = vld [vmem:[#allocation5 + $0xb0] sm:$0xff]
        %v251 = vld [vmem:[#allocation5 + $0xb8] sm:$0xff]
        %v252 = vld [vmem:[#allocation5 + $0xc0] sm:$0xff]
        %v253 = vld [vmem:[#allocation5 + $0xc8] sm:$0xff]
        %v254 = vld [vmem:[#allocation5 + $0xd0] sm:$0xff]
        %v255 = vld [vmem:[#allocation5 + $0xd8] sm:$0xff]
        %v256 = vld [vmem:[#allocation5 + $0xe0] sm:$0xff]
        %v257 = vld [vmem:[#allocation5 + $0xe8] sm:$0xff]
        %v258 = vld [vmem:[#allocation5 + $0xf0] sm:$0xff]
        %v259 = vld [vmem:[#allocation5 + $0xf8] sm:$0xff]
        %v260 = vand.u32 %v243, 4294901760
        %261 = vmatpush.msra.mxu0 %v260
        %v262 = vand.u32 %v242, 4294901760
        %263 = vmatpush.msra.mxu0 %v262
        %v264 = vand.u32 %v241, 4294901760
        %265 = vmatpush.msra.mxu0 %v264
        %v266 = vand.u32 %v240, 4294901760
        %267 = vmatpush.msra.mxu0 %v266
        %v268 = vand.u32 %v239, 4294901760
        %269 = vmatpush.msra.mxu0 %v268
        %v270 = vand.u32 %v238, 4294901760
        %271 = vmatpush.msra.mxu0 %v270
        %v272 = vand.u32 %v237, 4294901760
        %273 = vmatpush.msra.mxu0 %v272
        %v274 = vand.u32 %v236, 4294901760
        %275 = vmatpush.msra.mxu0 %v274
        %v276 = vand.u32 %v235, 4294901760
        %277 = vmatpush.msra.mxu0 %v276
        %v278 = vand.u32 %v234, 4294901760
        %279 = vmatpush.msra.mxu0 %v278
        %v280 = vand.u32 %v233, 4294901760
        %281 = vmatpush.msra.mxu0 %v280
        %v282 = vand.u32 %v232, 4294901760
        %283 = vmatpush.msra.mxu0 %v282
        %v284 = vand.u32 %v231, 4294901760
        %285 = vmatpush.msra.mxu0 %v284
        %v286 = vand.u32 %v230, 4294901760
        %287 = vmatpush.msra.mxu0 %v286
        %v288 = vand.u32 %v229, 4294901760
        %289 = vmatpush.msra.mxu0 %v288
        %v290 = vand.u32 %v228, 4294901760
        %291 = vmatpush.msra.mxu0 %v290
        %v292 = vand.u32 %v226, 4294901760
        %v293 = vsub.f32 %v226, %v292
        %v294 = vand.u32 %v293, 4294901760
        %v295 = vsub.f32 %v293, %v294
        %v296 = vand.u32 %v295, 4294901760
        %297 = vmatmul.f32.gmra.mxu0 %v296
        %v298 = vpop.f32.mrf.mxu0
        %v299 = vadd.f32 0.0, %v298
        %300 = vdwg.mxu0
        %v301 = vand.u32 %v243, 4294901760
        %v302 = vsub.f32 %v243, %v301
        %v303 = vand.u32 %v302, 4294901760
        %v304 = vsub.f32 %v302, %v303
        %v305 = vand.u32 %v304, 4294901760
        %306 = vmatpush.msra.mxu0 %v305
        %v307 = vand.u32 %v242, 4294901760
        %v308 = vsub.f32 %v242, %v307
        %v309 = vand.u32 %v308, 4294901760
        %v310 = vsub.f32 %v308, %v309
        %v311 = vand.u32 %v310, 4294901760
        %312 = vmatpush.msra.mxu0 %v311
        %v313 = vand.u32 %v241, 4294901760
        %v314 = vsub.f32 %v241, %v313
        %v315 = vand.u32 %v314, 4294901760
        %v316 = vsub.f32 %v314, %v315
        %v317 = vand.u32 %v316, 4294901760
        %318 = vmatpush.msra.mxu0 %v317
        %v319 = vand.u32 %v240, 4294901760
        %v320 = vsub.f32 %v240, %v319
        %v321 = vand.u32 %v320, 4294901760
        %v322 = vsub.f32 %v320, %v321
        %v323 = vand.u32 %v322, 4294901760
        %324 = vmatpush.msra.mxu0 %v323
        %v325 = vand.u32 %v239, 4294901760
        %v326 = vsub.f32 %v239, %v325
        %v327 = vand.u32 %v326, 4294901760
        %v328 = vsub.f32 %v326, %v327
        %v329 = vand.u32 %v328, 4294901760
        %330 = vmatpush.msra.mxu0 %v329
        %v331 = vand.u32 %v238, 4294901760
        %v332 = vsub.f32 %v238, %v331
        %v333 = vand.u32 %v332, 4294901760
        %v334 = vsub.f32 %v332, %v333
        %v335 = vand.u32 %v334, 4294901760
        %336 = vmatpush.msra.mxu0 %v335
        %v337 = vand.u32 %v237, 4294901760
        %v338 = vsub.f32 %v237, %v337
        %v339 = vand.u32 %v338, 4294901760
        %v340 = vsub.f32 %v338, %v339
        %v341 = vand.u32 %v340, 4294901760
        %342 = vmatpush.msra.mxu0 %v341
        %v343 = vand.u32 %v236, 4294901760
        %v344 = vsub.f32 %v236, %v343
        %v345 = vand.u32 %v344, 4294901760
        %v346 = vsub.f32 %v344, %v345
        %v347 = vand.u32 %v346, 4294901760
        %348 = vmatpush.msra.mxu0 %v347
        %v349 = vand.u32 %v235, 4294901760
        %v350 = vsub.f32 %v235, %v349
        %v351 = vand.u32 %v350, 4294901760
        %v352 = vsub.f32 %v350, %v351
        %v353 = vand.u32 %v352, 4294901760
        %354 = vmatpush.msra.mxu0 %v353
        %v355 = vand.u32 %v234, 4294901760
        %v356 = vsub.f32 %v234, %v355
        %v357 = vand.u32 %v356, 4294901760
        %v358 = vsub.f32 %v356, %v357
        %v359 = vand.u32 %v358, 4294901760
        %360 = vmatpush.msra.mxu0 %v359
        %v361 = vand.u32 %v233, 4294901760
        %v362 = vsub.f32 %v233, %v361
        %v363 = vand.u32 %v362, 4294901760
        %v364 = vsub.f32 %v362, %v363
        %v365 = vand.u32 %v364, 4294901760
        %366 = vmatpush.msra.mxu0 %v365
        %v367 = vand.u32 %v232, 4294901760
        %v368 = vsub.f32 %v232, %v367
        %v369 = vand.u32 %v368, 4294901760
        %v370 = vsub.f32 %v368, %v369
        %v371 = vand.u32 %v370, 4294901760
        %372 = vmatpush.msra.mxu0 %v371
        %v373 = vand.u32 %v231, 4294901760
        %v374 = vsub.f32 %v231, %v373
        %v375 = vand.u32 %v374, 4294901760
        %v376 = vsub.f32 %v374, %v375
        %v377 = vand.u32 %v376, 4294901760
        %378 = vmatpush.msra.mxu0 %v377
        %v379 = vand.u32 %v230, 4294901760
        %v380 = vsub.f32 %v230, %v379
        %v381 = vand.u32 %v380, 4294901760
        %v382 = vsub.f32 %v380, %v381
        %v383 = vand.u32 %v382, 4294901760
        %384 = vmatpush.msra.mxu0 %v383
        %v385 = vand.u32 %v229, 4294901760
        %v386 = vsub.f32 %v229, %v385
        %v387 = vand.u32 %v386, 4294901760
        %v388 = vsub.f32 %v386, %v387
        %v389 = vand.u32 %v388, 4294901760
        %390 = vmatpush.msra.mxu0 %v389
        %v391 = vand.u32 %v228, 4294901760
        %v392 = vsub.f32 %v228, %v391
        %v393 = vand.u32 %v392, 4294901760
        %v394 = vsub.f32 %v392, %v393
        %v395 = vand.u32 %v394, 4294901760
        %396 = vmatpush.msra.mxu0 %v395
        %v397 = vand.u32 %v226, 4294901760
        %398 = vmatmul.f32.gmra.mxu0 %v397
        %v399 = vpop.f32.mrf.mxu0
        %v400 = vadd.f32 %v299, %v399
        %401 = vdwg.mxu0
        %v402 = vand.u32 %v243, 4294901760
        %v403 = vsub.f32 %v243, %v402
        %404 = vmatpush.msra.mxu0 %v403
        %v405 = vand.u32 %v242, 4294901760
        %v406 = vsub.f32 %v242, %v405
        %407 = vmatpush.msra.mxu0 %v406
        %v408 = vand.u32 %v241, 4294901760
        %v409 = vsub.f32 %v241, %v408
        %410 = vmatpush.msra.mxu0 %v409
        %v411 = vand.u32 %v240, 4294901760
        %v412 = vsub.f32 %v240, %v411
        %413 = vmatpush.msra.mxu0 %v412
        %v414 = vand.u32 %v239, 4294901760
        %v415 = vsub.f32 %v239, %v414
        %416 = vmatpush.msra.mxu0 %v415
        %v417 = vand.u32 %v238, 4294901760
        %v418 = vsub.f32 %v238, %v417
        %419 = vmatpush.msra.mxu0 %v418
        %v420 = vand.u32 %v237, 4294901760
        %v421 = vsub.f32 %v237, %v420
        %422 = vmatpush.msra.mxu0 %v421
        %v423 = vand.u32 %v236, 4294901760
        %v424 = vsub.f32 %v236, %v423
        %425 = vmatpush.msra.mxu0 %v424
        %v426 = vand.u32 %v235, 4294901760
        %v427 = vsub.f32 %v235, %v426
        %428 = vmatpush.msra.mxu0 %v427
        %v429 = vand.u32 %v234, 4294901760
        %v430 = vsub.f32 %v234, %v429
        %431 = vmatpush.msra.mxu0 %v430
        %v432 = vand.u32 %v233, 4294901760
        %v433 = vsub.f32 %v233, %v432
        %434 = vmatpush.msra.mxu0 %v433
        %v435 = vand.u32 %v232, 4294901760
        %v436 = vsub.f32 %v232, %v435
        %437 = vmatpush.msra.mxu0 %v436
        %v438 = vand.u32 %v231, 4294901760
        %v439 = vsub.f32 %v231, %v438
        %440 = vmatpush.msra.mxu0 %v439
        %v441 = vand.u32 %v230, 4294901760
        %v442 = vsub.f32 %v230, %v441
        %443 = vmatpush.msra.mxu0 %v442
        %v444 = vand.u32 %v229, 4294901760
        %v445 = vsub.f32 %v229, %v444
        %446 = vmatpush.msra.mxu0 %v445
        %v447 = vand.u32 %v228, 4294901760
        %v448 = vsub.f32 %v228, %v447
        %449 = vmatpush.msra.mxu0 %v448
        %v450 = vand.u32 %v226, 4294901760
        %v451 = vsub.f32 %v226, %v450
        %452 = vmatmul.f32.gmra.mxu0 %v451
        %v453 = vpop.f32.mrf.mxu0
        %v454 = vadd.f32 %v400, %v453
        %455 = vdwg.mxu0
        %v456 = vand.u32 %v243, 4294901760
        %457 = vmatpush.msra.mxu0 %v456
        %v458 = vand.u32 %v242, 4294901760
        %459 = vmatpush.msra.mxu0 %v458
        %v460 = vand.u32 %v241, 4294901760
        %461 = vmatpush.msra.mxu0 %v460
        %v462 = vand.u32 %v240, 4294901760
        %463 = vmatpush.msra.mxu0 %v462
        %v464 = vand.u32 %v239, 4294901760
        %465 = vmatpush.msra.mxu0 %v464
        %v466 = vand.u32 %v238, 4294901760
        %467 = vmatpush.msra.mxu0 %v466
        %v468 = vand.u32 %v237, 4294901760
        %469 = vmatpush.msra.mxu0 %v468
        %v470 = vand.u32 %v236, 4294901760
        %471 = vmatpush.msra.mxu0 %v470
        %v472 = vand.u32 %v235, 4294901760
        %473 = vmatpush.msra.mxu0 %v472
        %v474 = vand.u32 %v234, 4294901760
        %475 = vmatpush.msra.mxu0 %v474
        %v476 = vand.u32 %v233, 4294901760
        %477 = vmatpush.msra.mxu0 %v476
        %v478 = vand.u32 %v232, 4294901760
        %479 = vmatpush.msra.mxu0 %v478
        %v480 = vand.u32 %v231, 4294901760
        %481 = vmatpush.msra.mxu0 %v480
        %v482 = vand.u32 %v230, 4294901760
        %483 = vmatpush.msra.mxu0 %v482
        %v484 = vand.u32 %v229, 4294901760
        %485 = vmatpush.msra.mxu0 %v484
        %v486 = vand.u32 %v228, 4294901760
        %487 = vmatpush.msra.mxu0 %v486
        %v488 = vand.u32 %v226, 4294901760
        %v489 = vsub.f32 %v226, %v488
        %v490 = vand.u32 %v489, 4294901760
        %491 = vmatmul.f32.gmra.mxu0 %v490
        %v492 = vpop.f32.mrf.mxu0
        %v493 = vadd.f32 %v454, %v492
        %494 = vdwg.mxu0
        %v495 = vand.u32 %v243, 4294901760
        %v496 = vsub.f32 %v243, %v495
        %v497 = vand.u32 %v496, 4294901760
        %498 = vmatpush.msra.mxu0 %v497
        %v499 = vand.u32 %v242, 4294901760
        %v500 = vsub.f32 %v242, %v499
        %v501 = vand.u32 %v500, 4294901760
        %502 = vmatpush.msra.mxu0 %v501
        %v503 = vand.u32 %v241, 4294901760
        %v504 = vsub.f32 %v241, %v503
        %v505 = vand.u32 %v504, 4294901760
        %506 = vmatpush.msra.mxu0 %v505
        %v507 = vand.u32 %v240, 4294901760
        %v508 = vsub.f32 %v240, %v507
        %v509 = vand.u32 %v508, 4294901760
        %510 = vmatpush.msra.mxu0 %v509
        %v511 = vand.u32 %v239, 4294901760
        %v512 = vsub.f32 %v239, %v511
        %v513 = vand.u32 %v512, 4294901760
        %514 = vmatpush.msra.mxu0 %v513
        %v515 = vand.u32 %v238, 4294901760
        %v516 = vsub.f32 %v238, %v515
        %v517 = vand.u32 %v516, 4294901760
        %518 = vmatpush.msra.mxu0 %v517
        %v519 = vand.u32 %v237, 4294901760
        %v520 = vsub.f32 %v237, %v519
        %v521 = vand.u32 %v520, 4294901760
        %522 = vmatpush.msra.mxu0 %v521
        %v523 = vand.u32 %v236, 4294901760
        %v524 = vsub.f32 %v236, %v523
        %v525 = vand.u32 %v524, 4294901760
        %526 = vmatpush.msra.mxu0 %v525
        %v527 = vand.u32 %v235, 4294901760
        %v528 = vsub.f32 %v235, %v527
        %v529 = vand.u32 %v528, 4294901760
        %530 = vmatpush.msra.mxu0 %v529
        %v531 = vand.u32 %v234, 4294901760
        %v532 = vsub.f32 %v234, %v531
        %v533 = vand.u32 %v532, 4294901760
        %534 = vmatpush.msra.mxu0 %v533
        %v535 = vand.u32 %v233, 4294901760
        %v536 = vsub.f32 %v233, %v535
        %v537 = vand.u32 %v536, 4294901760
        %538 = vmatpush.msra.mxu0 %v537
        %v539 = vand.u32 %v232, 4294901760
        %v540 = vsub.f32 %v232, %v539
        %v541 = vand.u32 %v540, 4294901760
        %542 = vmatpush.msra.mxu0 %v541
        %v543 = vand.u32 %v231, 4294901760
        %v544 = vsub.f32 %v231, %v543
        %v545 = vand.u32 %v544, 4294901760
        %546 = vmatpush.msra.mxu0 %v545
        %v547 = vand.u32 %v230, 4294901760
        %v548 = vsub.f32 %v230, %v547
        %v549 = vand.u32 %v548, 4294901760
        %550 = vmatpush.msra.mxu0 %v549
        %v551 = vand.u32 %v229, 4294901760
        %v552 = vsub.f32 %v229, %v551
        %v553 = vand.u32 %v552, 4294901760
        %554 = vmatpush.msra.mxu0 %v553
        %v555 = vand.u32 %v228, 4294901760
        %v556 = vsub.f32 %v228, %v555
        %v557 = vand.u32 %v556, 4294901760
        %558 = vmatpush.msra.mxu0 %v557
        %v559 = vand.u32 %v226, 4294901760
        %560 = vmatmul.f32.gmra.mxu0 %v559
        %v561 = vpop.f32.mrf.mxu0
        %v562 = vadd.f32 %v493, %v561
        %563 = vdwg.mxu0
        %v564 = vand.u32 %v243, 4294901760
        %565 = vmatpush.msra.mxu0 %v564
        %v566 = vand.u32 %v242, 4294901760
        %567 = vmatpush.msra.mxu0 %v566
        %v568 = vand.u32 %v241, 4294901760
        %569 = vmatpush.msra.mxu0 %v568
        %v570 = vand.u32 %v240, 4294901760
        %571 = vmatpush.msra.mxu0 %v570
        %v572 = vand.u32 %v239, 4294901760
        %573 = vmatpush.msra.mxu0 %v572
        %v574 = vand.u32 %v238, 4294901760
        %575 = vmatpush.msra.mxu0 %v574
        %v576 = vand.u32 %v237, 4294901760
        %577 = vmatpush.msra.mxu0 %v576
        %v578 = vand.u32 %v236, 4294901760
        %579 = vmatpush.msra.mxu0 %v578
        %v580 = vand.u32 %v235, 4294901760
        %581 = vmatpush.msra.mxu0 %v580
        %v582 = vand.u32 %v234, 4294901760
        %583 = vmatpush.msra.mxu0 %v582
        %v584 = vand.u32 %v233, 4294901760
        %585 = vmatpush.msra.mxu0 %v584
        %v586 = vand.u32 %v232, 4294901760
        %587 = vmatpush.msra.mxu0 %v586
        %v588 = vand.u32 %v231, 4294901760
        %589 = vmatpush.msra.mxu0 %v588
        %v590 = vand.u32 %v230, 4294901760
        %591 = vmatpush.msra.mxu0 %v590
        %v592 = vand.u32 %v229, 4294901760
        %593 = vmatpush.msra.mxu0 %v592
        %v594 = vand.u32 %v228, 4294901760
        %595 = vmatpush.msra.mxu0 %v594
        %v596 = vand.u32 %v226, 4294901760
        %597 = vmatmul.f32.gmra.mxu0 %v596
        %v598 = vpop.f32.mrf.mxu0
        %v599 = vadd.f32 %v562, %v598
        %600 = vdwg.mxu0
        %v601 = vand.u32 %v259, 4294901760
        %602 = vmatpush.msra.mxu0 %v601
        %v603 = vand.u32 %v258, 4294901760
        %604 = vmatpush.msra.mxu0 %v603
        %v605 = vand.u32 %v257, 4294901760
        %606 = vmatpush.msra.mxu0 %v605
        %v607 = vand.u32 %v256, 4294901760
        %608 = vmatpush.msra.mxu0 %v607
        %v609 = vand.u32 %v255, 4294901760
        %610 = vmatpush.msra.mxu0 %v609
        %v611 = vand.u32 %v254, 4294901760
        %612 = vmatpush.msra.mxu0 %v611
        %v613 = vand.u32 %v253, 4294901760
        %614 = vmatpush.msra.mxu0 %v613
        %v615 = vand.u32 %v252, 4294901760
        %616 = vmatpush.msra.mxu0 %v615
        %v617 = vand.u32 %v251, 4294901760
        %618 = vmatpush.msra.mxu0 %v617
        %v619 = vand.u32 %v250, 4294901760
        %620 = vmatpush.msra.mxu0 %v619
        %v621 = vand.u32 %v249, 4294901760
        %622 = vmatpush.msra.mxu0 %v621
        %v623 = vand.u32 %v248, 4294901760
        %624 = vmatpush.msra.mxu0 %v623
        %v625 = vand.u32 %v247, 4294901760
        %626 = vmatpush.msra.mxu0 %v625
        %v627 = vand.u32 %v246, 4294901760
        %628 = vmatpush.msra.mxu0 %v627
        %v629 = vand.u32 %v245, 4294901760
        %630 = vmatpush.msra.mxu0 %v629
        %v631 = vand.u32 %v244, 4294901760
        %632 = vmatpush.msra.mxu0 %v631
        %v633 = vand.u32 %v227, 4294901760
        %v634 = vsub.f32 %v227, %v633
        %v635 = vand.u32 %v634, 4294901760
        %v636 = vsub.f32 %v634, %v635
        %v637 = vand.u32 %v636, 4294901760
        %638 = vmatmul.f32.gmra.mxu0 %v637
        %v639 = vpop.f32.mrf.mxu0
        %v640 = vadd.f32 %v599, %v639
        %641 = vdwg.mxu0
        %v642 = vand.u32 %v259, 4294901760
        %v643 = vsub.f32 %v259, %v642
        %v644 = vand.u32 %v643, 4294901760
        %v645 = vsub.f32 %v643, %v644
        %v646 = vand.u32 %v645, 4294901760
        %647 = vmatpush.msra.mxu0 %v646
        %v648 = vand.u32 %v258, 4294901760
        %v649 = vsub.f32 %v258, %v648
        %v650 = vand.u32 %v649, 4294901760
        %v651 = vsub.f32 %v649, %v650
        %v652 = vand.u32 %v651, 4294901760
        %653 = vmatpush.msra.mxu0 %v652
        %v654 = vand.u32 %v257, 4294901760
        %v655 = vsub.f32 %v257, %v654
        %v656 = vand.u32 %v655, 4294901760
        %v657 = vsub.f32 %v655, %v656
        %v658 = vand.u32 %v657, 4294901760
        %659 = vmatpush.msra.mxu0 %v658
        %v660 = vand.u32 %v256, 4294901760
        %v661 = vsub.f32 %v256, %v660
        %v662 = vand.u32 %v661, 4294901760
        %v663 = vsub.f32 %v661, %v662
        %v664 = vand.u32 %v663, 4294901760
        %665 = vmatpush.msra.mxu0 %v664
        %v666 = vand.u32 %v255, 4294901760
        %v667 = vsub.f32 %v255, %v666
        %v668 = vand.u32 %v667, 4294901760
        %v669 = vsub.f32 %v667, %v668
        %v670 = vand.u32 %v669, 4294901760
        %671 = vmatpush.msra.mxu0 %v670
        %v672 = vand.u32 %v254, 4294901760
        %v673 = vsub.f32 %v254, %v672
        %v674 = vand.u32 %v673, 4294901760
        %v675 = vsub.f32 %v673, %v674
        %v676 = vand.u32 %v675, 4294901760
        %677 = vmatpush.msra.mxu0 %v676
        %v678 = vand.u32 %v253, 4294901760
        %v679 = vsub.f32 %v253, %v678
        %v680 = vand.u32 %v679, 4294901760
        %v681 = vsub.f32 %v679, %v680
        %v682 = vand.u32 %v681, 4294901760
        %683 = vmatpush.msra.mxu0 %v682
        %v684 = vand.u32 %v252, 4294901760
        %v685 = vsub.f32 %v252, %v684
        %v686 = vand.u32 %v685, 4294901760
        %v687 = vsub.f32 %v685, %v686
        %v688 = vand.u32 %v687, 4294901760
        %689 = vmatpush.msra.mxu0 %v688
        %v690 = vand.u32 %v251, 4294901760
        %v691 = vsub.f32 %v251, %v690
        %v692 = vand.u32 %v691, 4294901760
        %v693 = vsub.f32 %v691, %v692
        %v694 = vand.u32 %v693, 4294901760
        %695 = vmatpush.msra.mxu0 %v694
        %v696 = vand.u32 %v250, 4294901760
        %v697 = vsub.f32 %v250, %v696
        %v698 = vand.u32 %v697, 4294901760
        %v699 = vsub.f32 %v697, %v698
        %v700 = vand.u32 %v699, 4294901760
        %701 = vmatpush.msra.mxu0 %v700
        %v702 = vand.u32 %v249, 4294901760
        %v703 = vsub.f32 %v249, %v702
        %v704 = vand.u32 %v703, 4294901760
        %v705 = vsub.f32 %v703, %v704
        %v706 = vand.u32 %v705, 4294901760
        %707 = vmatpush.msra.mxu0 %v706
        %v708 = vand.u32 %v248, 4294901760
        %v709 = vsub.f32 %v248, %v708
        %v710 = vand.u32 %v709, 4294901760
        %v711 = vsub.f32 %v709, %v710
        %v712 = vand.u32 %v711, 4294901760
        %713 = vmatpush.msra.mxu0 %v712
        %v714 = vand.u32 %v247, 4294901760
        %v715 = vsub.f32 %v247, %v714
        %v716 = vand.u32 %v715, 4294901760
        %v717 = vsub.f32 %v715, %v716
        %v718 = vand.u32 %v717, 4294901760
        %719 = vmatpush.msra.mxu0 %v718
        %v720 = vand.u32 %v246, 4294901760
        %v721 = vsub.f32 %v246, %v720
        %v722 = vand.u32 %v721, 4294901760
        %v723 = vsub.f32 %v721, %v722
        %v724 = vand.u32 %v723, 4294901760
        %725 = vmatpush.msra.mxu0 %v724
        %v726 = vand.u32 %v245, 4294901760
        %v727 = vsub.f32 %v245, %v726
        %v728 = vand.u32 %v727, 4294901760
        %v729 = vsub.f32 %v727, %v728
        %v730 = vand.u32 %v729, 4294901760
        %731 = vmatpush.msra.mxu0 %v730
        %v732 = vand.u32 %v244, 4294901760
        %v733 = vsub.f32 %v244, %v732
        %v734 = vand.u32 %v733, 4294901760
        %v735 = vsub.f32 %v733, %v734
        %v736 = vand.u32 %v735, 4294901760
        %737 = vmatpush.msra.mxu0 %v736
        %v738 = vand.u32 %v227, 4294901760
        %739 = vmatmul.f32.gmra.mxu0 %v738
        %v740 = vpop.f32.mrf.mxu0
        %v741 = vadd.f32 %v640, %v740
        %742 = vdwg.mxu0
        %v743 = vand.u32 %v259, 4294901760
        %v744 = vsub.f32 %v259, %v743
        %745 = vmatpush.msra.mxu0 %v744
        %v746 = vand.u32 %v258, 4294901760
        %v747 = vsub.f32 %v258, %v746
        %748 = vmatpush.msra.mxu0 %v747
        %v749 = vand.u32 %v257, 4294901760
        %v750 = vsub.f32 %v257, %v749
        %751 = vmatpush.msra.mxu0 %v750
        %v752 = vand.u32 %v256, 4294901760
        %v753 = vsub.f32 %v256, %v752
        %754 = vmatpush.msra.mxu0 %v753
        %v755 = vand.u32 %v255, 4294901760
        %v756 = vsub.f32 %v255, %v755
        %757 = vmatpush.msra.mxu0 %v756
        %v758 = vand.u32 %v254, 4294901760
        %v759 = vsub.f32 %v254, %v758
        %760 = vmatpush.msra.mxu0 %v759
        %v761 = vand.u32 %v253, 4294901760
        %v762 = vsub.f32 %v253, %v761
        %763 = vmatpush.msra.mxu0 %v762
        %v764 = vand.u32 %v252, 4294901760
        %v765 = vsub.f32 %v252, %v764
        %766 = vmatpush.msra.mxu0 %v765
        %v767 = vand.u32 %v251, 4294901760
        %v768 = vsub.f32 %v251, %v767
        %769 = vmatpush.msra.mxu0 %v768
        %v770 = vand.u32 %v250, 4294901760
        %v771 = vsub.f32 %v250, %v770
        %772 = vmatpush.msra.mxu0 %v771
        %v773 = vand.u32 %v249, 4294901760
        %v774 = vsub.f32 %v249, %v773
        %775 = vmatpush.msra.mxu0 %v774
        %v776 = vand.u32 %v248, 4294901760
        %v777 = vsub.f32 %v248, %v776
        %778 = vmatpush.msra.mxu0 %v777
        %v779 = vand.u32 %v247, 4294901760
        %v780 = vsub.f32 %v247, %v779
        %781 = vmatpush.msra.mxu0 %v780
        %v782 = vand.u32 %v246, 4294901760
        %v783 = vsub.f32 %v246, %v782
        %784 = vmatpush.msra.mxu0 %v783
        %v785 = vand.u32 %v245, 4294901760
        %v786 = vsub.f32 %v245, %v785
        %787 = vmatpush.msra.mxu0 %v786
        %v788 = vand.u32 %v244, 4294901760
        %v789 = vsub.f32 %v244, %v788
        %790 = vmatpush.msra.mxu0 %v789
        %v791 = vand.u32 %v227, 4294901760
        %v792 = vsub.f32 %v227, %v791
        %793 = vmatmul.f32.gmra.mxu0 %v792
        %v794 = vpop.f32.mrf.mxu0
        %v795 = vadd.f32 %v741, %v794
        %796 = vdwg.mxu0
        %v797 = vand.u32 %v259, 4294901760
        %798 = vmatpush.msra.mxu0 %v797
        %v799 = vand.u32 %v258, 4294901760
        %800 = vmatpush.msra.mxu0 %v799
        %v801 = vand.u32 %v257, 4294901760
        %802 = vmatpush.msra.mxu0 %v801
        %v803 = vand.u32 %v256, 4294901760
        %804 = vmatpush.msra.mxu0 %v803
        %v805 = vand.u32 %v255, 4294901760
        %806 = vmatpush.msra.mxu0 %v805
        %v807 = vand.u32 %v254, 4294901760
        %808 = vmatpush.msra.mxu0 %v807
        %v809 = vand.u32 %v253, 4294901760
        %810 = vmatpush.msra.mxu0 %v809
        %v811 = vand.u32 %v252, 4294901760
        %812 = vmatpush.msra.mxu0 %v811
        %v813 = vand.u32 %v251, 4294901760
        %814 = vmatpush.msra.mxu0 %v813
        %v815 = vand.u32 %v250, 4294901760
        %816 = vmatpush.msra.mxu0 %v815
        %v817 = vand.u32 %v249, 4294901760
        %818 = vmatpush.msra.mxu0 %v817
        %v819 = vand.u32 %v248, 4294901760
        %820 = vmatpush.msra.mxu0 %v819
        %v821 = vand.u32 %v247, 4294901760
        %822 = vmatpush.msra.mxu0 %v821
        %v823 = vand.u32 %v246, 4294901760
        %824 = vmatpush.msra.mxu0 %v823
        %v825 = vand.u32 %v245, 4294901760
        %826 = vmatpush.msra.mxu0 %v825
        %v827 = vand.u32 %v244, 4294901760
        %828 = vmatpush.msra.mxu0 %v827
        %v829 = vand.u32 %v227, 4294901760
        %v830 = vsub.f32 %v227, %v829
        %v831 = vand.u32 %v830, 4294901760
        %832 = vmatmul.f32.gmra.mxu0 %v831
        %v833 = vpop.f32.mrf.mxu0
        %v834 = vadd.f32 %v795, %v833
        %835 = vdwg.mxu0
        %v836 = vand.u32 %v259, 4294901760
        %v837 = vsub.f32 %v259, %v836
        %v838 = vand.u32 %v837, 4294901760
        %839 = vmatpush.msra.mxu0 %v838
        %v840 = vand.u32 %v258, 4294901760
        %v841 = vsub.f32 %v258, %v840
        %v842 = vand.u32 %v841, 4294901760
        %843 = vmatpush.msra.mxu0 %v842
        %v844 = vand.u32 %v257, 4294901760
        %v845 = vsub.f32 %v257, %v844
        %v846 = vand.u32 %v845, 4294901760
        %847 = vmatpush.msra.mxu0 %v846
        %v848 = vand.u32 %v256, 4294901760
        %v849 = vsub.f32 %v256, %v848
        %v850 = vand.u32 %v849, 4294901760
        %851 = vmatpush.msra.mxu0 %v850
        %v852 = vand.u32 %v255, 4294901760
        %v853 = vsub.f32 %v255, %v852
        %v854 = vand.u32 %v853, 4294901760
        %855 = vmatpush.msra.mxu0 %v854
        %v856 = vand.u32 %v254, 4294901760
        %v857 = vsub.f32 %v254, %v856
        %v858 = vand.u32 %v857, 4294901760
        %859 = vmatpush.msra.mxu0 %v858
        %v860 = vand.u32 %v253, 4294901760
        %v861 = vsub.f32 %v253, %v860
        %v862 = vand.u32 %v861, 4294901760
        %863 = vmatpush.msra.mxu0 %v862
        %v864 = vand.u32 %v252, 4294901760
        %v865 = vsub.f32 %v252, %v864
        %v866 = vand.u32 %v865, 4294901760
        %867 = vmatpush.msra.mxu0 %v866
        %v868 = vand.u32 %v251, 4294901760
        %v869 = vsub.f32 %v251, %v868
        %v870 = vand.u32 %v869, 4294901760
        %871 = vmatpush.msra.mxu0 %v870
        %v872 = vand.u32 %v250, 4294901760
        %v873 = vsub.f32 %v250, %v872
        %v874 = vand.u32 %v873, 4294901760
        %875 = vmatpush.msra.mxu0 %v874
        %v876 = vand.u32 %v249, 4294901760
        %v877 = vsub.f32 %v249, %v876
        %v878 = vand.u32 %v877, 4294901760
        %879 = vmatpush.msra.mxu0 %v878
        %v880 = vand.u32 %v248, 4294901760
        %v881 = vsub.f32 %v248, %v880
        %v882 = vand.u32 %v881, 4294901760
        %883 = vmatpush.msra.mxu0 %v882
        %v884 = vand.u32 %v247, 4294901760
        %v885 = vsub.f32 %v247, %v884
        %v886 = vand.u32 %v885, 4294901760
        %887 = vmatpush.msra.mxu0 %v886
        %v888 = vand.u32 %v246, 4294901760
        %v889 = vsub.f32 %v246, %v888
        %v890 = vand.u32 %v889, 4294901760
        %891 = vmatpush.msra.mxu0 %v890
        %v892 = vand.u32 %v245, 4294901760
        %v893 = vsub.f32 %v245, %v892
        %v894 = vand.u32 %v893, 4294901760
        %895 = vmatpush.msra.mxu0 %v894
        %v896 = vand.u32 %v244, 4294901760
        %v897 = vsub.f32 %v244, %v896
        %v898 = vand.u32 %v897, 4294901760
        %899 = vmatpush.msra.mxu0 %v898
        %v900 = vand.u32 %v227, 4294901760
        %901 = vmatmul.f32.gmra.mxu0 %v900
        %v902 = vpop.f32.mrf.mxu0
        %v903 = vadd.f32 %v834, %v902
        %904 = vdwg.mxu0
        %v905 = vand.u32 %v259, 4294901760
        %906 = vmatpush.msra.mxu0 %v905
        %v907 = vand.u32 %v258, 4294901760
        %908 = vmatpush.msra.mxu0 %v907
        %v909 = vand.u32 %v257, 4294901760
        %910 = vmatpush.msra.mxu0 %v909
        %v911 = vand.u32 %v256, 4294901760
        %912 = vmatpush.msra.mxu0 %v911
        %v913 = vand.u32 %v255, 4294901760
        %914 = vmatpush.msra.mxu0 %v913
        %v915 = vand.u32 %v254, 4294901760
        %916 = vmatpush.msra.mxu0 %v915
        %v917 = vand.u32 %v253, 4294901760
        %918 = vmatpush.msra.mxu0 %v917
        %v919 = vand.u32 %v252, 4294901760
        %920 = vmatpush.msra.mxu0 %v919
        %v921 = vand.u32 %v251, 4294901760
        %922 = vmatpush.msra.mxu0 %v921
        %v923 = vand.u32 %v250, 4294901760
        %924 = vmatpush.msra.mxu0 %v923
        %v925 = vand.u32 %v249, 4294901760
        %926 = vmatpush.msra.mxu0 %v925
        %v927 = vand.u32 %v248, 4294901760
        %928 = vmatpush.msra.mxu0 %v927
        %v929 = vand.u32 %v247, 4294901760
        %930 = vmatpush.msra.mxu0 %v929
        %v931 = vand.u32 %v246, 4294901760
        %932 = vmatpush.msra.mxu0 %v931
        %v933 = vand.u32 %v245, 4294901760
        %934 = vmatpush.msra.mxu0 %v933
        %v935 = vand.u32 %v244, 4294901760
        %936 = vmatpush.msra.mxu0 %v935
        %v937 = vand.u32 %v227, 4294901760
        %938 = vmatmul.f32.gmra.mxu0 %v937
        %v939 = vpop.f32.mrf.mxu0
        %v940 = vadd.f32 %v903, %v939
        %941 = vdwg.mxu0
        %v942 = vmul.f32 %v940, 0.5
        %v943 = vmul.f32 %v942, %v942
        %v944 = vadd.f32 %v943, 1e-05
        %v945 = vrsqrt.pop %v944
        %v946 = vmul.f32 %v945, %v944
        %v947 = vmul.f32 %v946, %v945
        %v948 = vmul.f32 0.5, %v947
        %v949 = vsub.f32 1.5, %v948
        %v950 = vmul.f32 %v945, %v949
        %vm951 = vweird.f32 %v944
        %vm952 = vweird.f32 %v945
        %vm953 = vmor %vm951, %vm952
        %v954 = vsel %vm953, %v945, %v950
        %v955 = vmul.f32 %v942, %v954
        %v956 = vld [vmem:[#allocation7] sm:$0x3]
        %v957 = vperm.slane %v956, 0
        %v958 = vmul.f32 %v955, %v957
        %v959 = vperm.slane %v956, 1
        %v960 = vadd.f32 %v958, %v959
        %961 = vst [vmem:[%s221] sm:$0xff] %v960
        %s962 = sand.u32 %s97, 1
        %s963 = scalar_lea.sflag [#allocation4], %s962
        %s964 = sand.u32 %s97, 1
        %s965 = smul.addr %s964, 8
        %s966 = scalar_lea.vmem [#allocation8], %s965
        // Predicated region
        $region45: #{tpu_custom_call.1} parent=31 // pred_check
          %p967 = pneg %p107
        $region46: #{tpu_custom_call.1} parent=31 // pred_check_branch
          %969 = sbr.rel (%p967) target = $region48
        $region47: #{tpu_custom_call.1} parent=31 // pred_region
          %971 = vsyncadd %s963, 0
          %s972 = smul.addr %s21, 8
          %s973 = scalar_lea.hbm %s3, %s972
          %s975 = sshll.u32 %s966, 4
          %s976 = int_to_ptr.vmem [resolvable:$true] %s975
          %s977 = sshll.u32 %s973, 4
          %s978 = int_to_ptr.hbm [resolvable:$true] %s977
          %980 = dma.vmem_to_hbm [thread:$0]  %s976, 128, %s978, %s963
        $region48: #{tpu_custom_call.1} parent=31 // pred_fallthru
          _
      $region32: #{tpu_custom_call.1} parent=5 // pred_fallthru
        _
      %p981 = scmp.le.s32.totalorder 2, %s16
      // Predicated region
      $region49: #{tpu_custom_call.1} parent=5 // pred_check
        %p982 = pneg %p981
      $region50: #{tpu_custom_call.1} parent=5 // pred_check_branch
        %984 = sbr.rel (%p982) target = $region52
      $region51: #{tpu_custom_call.1} parent=5 // pred_region
        %s985 = ssub.s32 %s16, 2
        // Predicated region
        $region53: #{tpu_custom_call.1} parent=51 // pred_check
          %p986 = pneg %p113
        $region54: #{tpu_custom_call.1} parent=51 // pred_check_branch
          %988 = sbr.rel (%p986) target = $region56
        $region55: #{tpu_custom_call.1} parent=51 // pred_region
          %s989 = sand.u32 %s98, 1
          %s990 = scalar_lea.sflag [#allocation4], %s989
          %s991 = sand.u32 %s98, 1
          %s992 = smul.addr %s991, 8
          %s993 = scalar_lea.vmem [#allocation8], %s992
          %995 = dma.done %s990, 128
        $region56: #{tpu_custom_call.1} parent=51 // pred_fallthru
          _
      $region52: #{tpu_custom_call.1} parent=5 // pred_fallthru
        _
    $region6: #{tpu_custom_call.1} parent=1 // loop_footer
      %s20 = sadd.s32 1, %s16
    $region7: #{tpu_custom_call.1} parent=1 // loop_footer_branch
      %15 = sbr.rel target = $region3
    $region8: #{tpu_custom_call.1} parent=1 // loop_exit
      _
    %996 = vsyncpa [#allocation3], 1
    %s997 = scalar_lea.sflag [#allocation3], 1
    %998 = vsyncpa %s997, 1
    %999 = vsyncpa [#allocation6], 1
    %1000 = vsyncpa [#allocation4], 1
    %s1001 = scalar_lea.sflag [#allocation4], 1
    %1002 = vsyncpa %s1001, 1

</llo_original>
